<compile_context>
chip_gen: v5e
topology: v5e:2x2
jax: 0.10.0
libtpu: 0.0.40
codegen_flags: <defaults>
</compile_context>

<pallas_src>
import functools

import jax
import jax.numpy as jnp
from jax.experimental import pallas as pl
from jax.experimental.pallas import tpu as pltpu


def _round_up(x: int, m: int) -> int:
    return ((x + m - 1) // m) * m


def _cdiv(a: int, b: int) -> int:
    return -(-a // b)


def _choose_tiling(B: int, tb_max: int = 512):
    """Pick (padded_batch, batch_tile, n_tiles): sublane-aligned tiles,
    TB <= tb_max, minimal zero-row padding, and >= 2 grid steps whenever there
    is enough work (so the batch axis can shard across the 2 v7x TensorCores)."""
    Bp = _round_up(B, 8)
    ntiles = _cdiv(Bp, tb_max)
    if Bp >= 16:
        ntiles = max(ntiles, 2)
    tb = _round_up(_cdiv(Bp, ntiles), 8)
    return ntiles * tb, tb, ntiles


def _use_bf16_tanh() -> bool:
    """bf16 tanh (EUP) on v6e / v7x; f32 on v5e and earlier (no bf16 EUP/VPU)."""
    try:
        dk = jax.devices()[0].device_kind.lower()
    except Exception:
        return False
    return not any(v in dk for v in ("v2", "v3", "v4", "v5"))


def neural_ode_rk4_kernel(dt_ref, y0_ref, w1_ref, b1_ref, w2_ref, b2_ref,
                          w3_ref, b3_ref, out_ref, *, act_dtype):
    f32 = jnp.float32
    bf16 = jnp.bfloat16

    # Hoisted scalar dt math (done once, reused along the serial chain).
    dt = dt_ref[0, 0]
    half_dt = 0.5 * dt
    dt_over_6 = dt * (1.0 / 6.0)

    y0 = y0_ref[...]                       # (TB, Dp) f32

    # Weights arrive in bf16 (halved VMEM/HBM footprint, full MXU rate).
    w1 = w1_ref[...]
    w2 = w2_ref[...]
    w3 = w3_ref[...]

    # Bias rows stay (1, Hp)/(1, Dp): added directly after each matmul; the
    # VPU broadcasts along sublanes (stride-0 read), so no (TB, Hp) f32 bias
    # tiles are materialized / held live (previous version spilled here).
    b1 = b1_ref[...]
    b2 = b2_ref[...]
    b3 = b3_ref[...]

    def f(y):
        # bf16 only at the MXU inputs; f32 accumulation; bias add in f32;
        # tanh in act_dtype (bf16 on v6e/v7x, f32 on v5e).
        h1 = jnp.tanh(
            (jnp.dot(y.astype(bf16), w1, preferred_element_type=f32) + b1
             ).astype(act_dtype))
        h2 = jnp.tanh(
            (jnp.dot(h1.astype(bf16), w2, preferred_element_type=f32) + b2
             ).astype(act_dtype))
        return jnp.dot(h2.astype(bf16), w3, preferred_element_type=f32) + b3

    # RK4 step (autonomous ODE) with an incremental accumulator: only y0, acc
    # and the current k are live across the four f() evaluations, keeping the
    # working set inside the 64-vreg file even at TB=512.
    k = f(y0)                                   # k1
    acc = k
    k = f(y0 + half_dt * k)                     # k2
    acc = acc + 2.0 * k
    k = f(y0 + half_dt * k)                     # k3
    acc = acc + 2.0 * k
    k = f(y0 + dt * k)                          # k4
    out_ref[...] = (y0 + dt_over_6 * (acc + k)).astype(out_ref.dtype)


def prepare_params(params):
    """One-time padding + bf16 cast of the vector-field parameters (hoisted out
    of the per-step wrapper). Zero padding is mathematically exact: padded
    weight/bias entries are 0, so padded state/hidden columns stay exactly 0
    through tanh and the RK4 combination."""
    w1, b1, w2, b2, w3, b3 = params
    D, H = w1.shape
    Dp = _round_up(D, 128)
    Hp = _round_up(H, 128)
    f32, bf16 = jnp.float32, jnp.bfloat16

    w1p = jnp.zeros((Dp, Hp), bf16).at[:D, :H].set(w1.astype(bf16))
    b1p = jnp.zeros((1, Hp), f32).at[:, :H].set(b1.reshape(1, H).astype(f32))
    w2p = jnp.zeros((Hp, Hp), bf16).at[:H, :H].set(w2.astype(bf16))
    b2p = jnp.zeros((1, Hp), f32).at[:, :H].set(b2.reshape(1, H).astype(f32))
    w3p = jnp.zeros((Hp, Dp), bf16).at[:H, :D].set(w3.astype(bf16))
    b3p = jnp.zeros((1, Dp), f32).at[:, :D].set(b3.reshape(1, D).astype(f32))
    return dict(D=D, H=H, Dp=Dp, Hp=Hp,
                w1=w1p, b1=b1p, w2=w2p, b2=b2p, w3=w3p, b3=b3p)


def neural_ode_step(y0, dt, prep, *, tanh_in_bf16=None):
    """Pallas-backed NeuralODE.forward((y0, dt)) for one RK4 step."""
    f32 = jnp.float32
    D, Dp, Hp = prep["D"], prep["Dp"], prep["Hp"]
    B = y0.shape[0]
    assert y0.shape[1] == D

    if tanh_in_bf16 is None:
        tanh_in_bf16 = _use_bf16_tanh()
    act_dtype = jnp.bfloat16 if tanh_in_bf16 else f32

    Bp, TB, ntiles = _choose_tiling(B)

    # Only y0 is padded per call; weights/biases come pre-padded from prep.
    y0p = jnp.zeros((Bp, Dp), f32).at[:B, :D].set(y0.astype(f32))
    dt2 = jnp.asarray(dt, f32).reshape(1, 1)

    const = lambda i: (0, 0)   # weights/biases stay VMEM-resident across steps

    # Single-buffer the VMEM-resident weights only when they are large enough
    # for double-buffering to matter for the VMEM budget (large H). At small
    # H (the example) keep the default, already-validated pipelining path.
    weight_bytes = 2 * (Dp * Hp + Hp * Hp + Hp * Dp)          # bf16
    single_buffer_weights = weight_bytes > (4 << 20)

    def wspec(shape):
        if single_buffer_weights:
            return pl.BlockSpec(shape, const, pipeline_mode=pl.Buffered(1))
        return pl.BlockSpec(shape, const)

    # Explicit scoped-VMEM budget (defaults: 16 MiB v5e, 32 MiB v6e/v7x).
    wbuf = 1 if single_buffer_weights else 2
    need = (wbuf * weight_bytes                              # bf16 weights
            + wbuf * 4 * (2 * Hp + Dp)                       # f32 biases
            + 2 * TB * Dp * 4                                # y0 (double-buffered)
            + 2 * TB * Dp * 4                                # y1 (double-buffered)
            + 12 * TB * max(Hp, Dp) * 4)                     # live f32 temps, headroom
    vmem_limit = int(min(max(int(1.5 * need), 32 << 20), 64 << 20))

    flops = 4 * 2 * Bp * (Dp * Hp + Hp * Hp + Hp * Dp)       # 12 matmuls
    transcendentals = 4 * 2 * Bp * Hp                        # 8 tanh layers
    bytes_accessed = (2 * Bp * Dp * 4                        # y0 in + y1 out
                      + weight_bytes                         # bf16 weights
                      + (2 * Hp + Dp) * 4                    # f32 biases
                      + 4)                                   # dt

    # (name, value, spec): alias index for y0 is derived from this list so a
    # future re-ordering cannot silently alias the wrong buffer.
    operands = [
        ("dt", dt2, pl.BlockSpec((1, 1), const,
                                 memory_space=pltpu.MemorySpace.SMEM)),
        ("y0", y0p, pl.BlockSpec((TB, Dp), lambda i: (i, 0))),
        ("w1", prep["w1"], wspec((Dp, Hp))),
        ("b1", prep["b1"], wspec((1, Hp))),
        ("w2", prep["w2"], wspec((Hp, Hp))),
        ("b2", prep["b2"], wspec((1, Hp))),
        ("w3", prep["w3"], wspec((Hp, Dp))),
        ("b3", prep["b3"], wspec((1, Dp))),
    ]
    y0_idx = [name for name, _, _ in operands].index("y0")

    out = pl.pallas_call(
        functools.partial(neural_ode_rk4_kernel, act_dtype=act_dtype),
        out_shape=jax.ShapeDtypeStruct((Bp, Dp), f32),
        grid=(ntiles,),
        in_specs=[spec for _, _, spec in operands],
        out_specs=pl.BlockSpec((TB, Dp), lambda i: (i, 0)),
        input_output_aliases={y0_idx: 0},   # y0p is wrapper-owned (padded copy)
        compiler_params=pltpu.CompilerParams(
            dimension_semantics=("parallel",),
            vmem_limit_bytes=vmem_limit),
        cost_estimate=pl.CostEstimate(
            flops=flops,
            transcendentals=transcendentals,
            bytes_accessed=bytes_accessed),
    )(*[val for _, val, _ in operands])

    return out[:B, :D]


def _reference_step(y0, dt, params, matmul_dtype=jnp.float32,
                    act_dtype=jnp.float32):
    """Pure-JAX reference RK4 step with configurable matmul/tanh precision."""
    w1, b1, w2, b2, w3, b3 = params
    dtv = jnp.asarray(dt, jnp.float32).reshape(())
    wm1 = w1.astype(matmul_dtype)
    wm2 = w2.astype(matmul_dtype)
    wm3 = w3.astype(matmul_dtype)

    def f(y):
        h1 = jnp.tanh(
            (jnp.dot(y.astype(matmul_dtype), wm1,
                     preferred_element_type=jnp.float32)
             + b1.reshape(1, -1)).astype(act_dtype))
        h2 = jnp.tanh(
            (jnp.dot(h1.astype(matmul_dtype), wm2,
                     preferred_element_type=jnp.float32)
             + b2.reshape(1, -1)).astype(act_dtype))
        return jnp.dot(h2.astype(matmul_dtype), wm3,
                       preferred_element_type=jnp.float32) + b3.reshape(1, -1)

    k1 = f(y0)
    k2 = f(y0 + 0.5 * dtv * k1)
    k3 = f(y0 + 0.5 * dtv * k2)
    k4 = f(y0 + dtv * k3)
    return y0 + (dtv / 6.0) * (k1 + 2.0 * k2 + 2.0 * k3 + k4)


def init_params(key, state_dim, hidden_dim):
    """Deterministic MLP vector-field parameters (synthetic, not a checkpoint)."""
    k1, k2, k3 = jax.random.split(key, 3)
    s1 = 1.0 / jnp.sqrt(jnp.float32(state_dim))
    s2 = 1.0 / jnp.sqrt(jnp.float32(hidden_dim))
    w1 = jax.random.normal(k1, (state_dim, hidden_dim), jnp.float32) * s1
    b1 = jnp.zeros((1, hidden_dim), jnp.float32)
    w2 = jax.random.normal(k2, (hidden_dim, hidden_dim), jnp.float32) * s2
    b2 = jnp.zeros((1, hidden_dim), jnp.float32)
    w3 = jax.random.normal(k3, (hidden_dim, state_dim), jnp.float32) * s2
    b3 = jnp.zeros((1, state_dim), jnp.float32)
    return (w1, b1, w2, b2, w3, b3)


if __name__ == "__main__":
    B, D, H = 8, 8, 32          # batch, state dim, hidden dim (small example)

    key = jax.random.PRNGKey(0)
    kp, ky = jax.random.split(key)
    params = init_params(kp, D, H)
    prep = prepare_params(params)       # one-time padding + bf16 cast

    y0 = jax.random.normal(ky, (B, D), jnp.float32)
    dt = jnp.full((1, 1), 0.1, jnp.float32)

    tanh_in_bf16 = _use_bf16_tanh()
    y1 = jax.block_until_ready(
        neural_ode_step(y0, dt, prep, tanh_in_bf16=tanh_in_bf16))
    assert y1.shape == (B, D)

    # Numerics check: moderately tight vs a reference with the same precision
    # choices (bf16 at the MXU, matching tanh dtype), loose vs full-f32 RK4.
    act_dtype = jnp.bfloat16 if tanh_in_bf16 else jnp.float32
    y1_ref_matched = _reference_step(y0, dt, params,
                                     matmul_dtype=jnp.bfloat16,
                                     act_dtype=act_dtype)
    y1_ref_f32 = _reference_step(y0, dt, params)
    assert jnp.allclose(y1, y1_ref_matched, atol=5e-3, rtol=5e-3), \
        "mismatch vs matched-precision reference"
    assert jnp.allclose(y1, y1_ref_f32, atol=5e-2, rtol=5e-2), \
        "mismatch vs f32 reference"

    print("KERNEL_OK")
</pallas_src>

<mosaic_0001>
module attributes {stable_mosaic.version = 11 : i64} {
  func.func @neural_ode_rk4_kernel(%arg0: i32, %arg1: memref<1x1xf32, #tpu.memory_space<smem>>, %arg2: memref<8x128xf32, #tpu.memory_space<vmem>>, %arg3: memref<128x128xbf16, #tpu.memory_space<vmem>>, %arg4: memref<1x128xf32, #tpu.memory_space<vmem>>, %arg5: memref<128x128xbf16, #tpu.memory_space<vmem>>, %arg6: memref<1x128xf32, #tpu.memory_space<vmem>>, %arg7: memref<128x128xbf16, #tpu.memory_space<vmem>>, %arg8: memref<1x128xf32, #tpu.memory_space<vmem>>, %arg9: memref<8x128xf32, #tpu.memory_space<vmem>>) attributes {dimension_semantics = [#tpu.dimension_semantics<parallel>], iteration_bounds = array<i64: 1>, scalar_prefetch = 0 : i64, scratch_operands = 0 : i64, tpu.core_type = #tpu.core_type<tc>, window_params = [{transform_indices = @transform_0, window_bounds = array<i64: 1, 1>}, {transform_indices = @transform_1, window_bounds = array<i64: 8, 128>}, {pipeline_mode = #tpu.pipeline_mode<synchronous>, transform_indices = @transform_2, window_bounds = array<i64: 128, 128>}, {pipeline_mode = #tpu.pipeline_mode<synchronous>, transform_indices = @transform_3, window_bounds = array<i64: 1, 128>}, {pipeline_mode = #tpu.pipeline_mode<synchronous>, transform_indices = @transform_4, window_bounds = array<i64: 128, 128>}, {pipeline_mode = #tpu.pipeline_mode<synchronous>, transform_indices = @transform_5, window_bounds = array<i64: 1, 128>}, {pipeline_mode = #tpu.pipeline_mode<synchronous>, transform_indices = @transform_6, window_bounds = array<i64: 128, 128>}, {pipeline_mode = #tpu.pipeline_mode<synchronous>, transform_indices = @transform_7, window_bounds = array<i64: 1, 128>}, {transform_indices = @transform_8, window_bounds = array<i64: 8, 128>}]} {
    %c0 = arith.constant 0 : index
    %c0_0 = arith.constant 0 : index
    %0 = memref.load %arg1[%c0, %c0_0] : memref<1x1xf32, #tpu.memory_space<smem>>
    %cst = arith.constant 5.000000e-01 : f32
    %1 = arith.mulf %cst, %0 : f32
    %cst_1 = arith.constant 0.166666672 : f32
    %2 = arith.mulf %0, %cst_1 : f32
    %c0_2 = arith.constant 0 : index
    %c0_3 = arith.constant 0 : index
    %3 = vector.load %arg2[%c0_2, %c0_3] : memref<8x128xf32, #tpu.memory_space<vmem>>, vector<8x128xf32>
    %c0_4 = arith.constant 0 : index
    %c0_5 = arith.constant 0 : index
    %4 = vector.load %arg3[%c0_4, %c0_5] : memref<128x128xbf16, #tpu.memory_space<vmem>>, vector<128x128xbf16>
    %c0_6 = arith.constant 0 : index
    %c0_7 = arith.constant 0 : index
    %5 = vector.load %arg5[%c0_6, %c0_7] : memref<128x128xbf16, #tpu.memory_space<vmem>>, vector<128x128xbf16>
    %c0_8 = arith.constant 0 : index
    %c0_9 = arith.constant 0 : index
    %6 = vector.load %arg7[%c0_8, %c0_9] : memref<128x128xbf16, #tpu.memory_space<vmem>>, vector<128x128xbf16>
    %c0_10 = arith.constant 0 : index
    %c0_11 = arith.constant 0 : index
    %7 = vector.load %arg4[%c0_10, %c0_11] : memref<1x128xf32, #tpu.memory_space<vmem>>, vector<1x128xf32>
    %c0_12 = arith.constant 0 : index
    %c0_13 = arith.constant 0 : index
    %8 = vector.load %arg6[%c0_12, %c0_13] : memref<1x128xf32, #tpu.memory_space<vmem>>, vector<1x128xf32>
    %c0_14 = arith.constant 0 : index
    %c0_15 = arith.constant 0 : index
    %9 = vector.load %arg8[%c0_14, %c0_15] : memref<1x128xf32, #tpu.memory_space<vmem>>, vector<1x128xf32>
    %10 = arith.truncf %3 : vector<8x128xf32> to vector<8x128xbf16>
    %cst_16 = arith.constant dense<0.000000e+00> : vector<8x128xf32>
    %11 = tpu.matmul %10, %4, %cst_16 {dimension_numbers = #tpu.dot_dimension_numbers<[1], [0], [0], [1], [0, 0, 1, 1], [], []>} : vector<8x128xbf16>, vector<128x128xbf16>, vector<8x128xf32> -> vector<8x128xf32>
    %12 = vector.broadcast %7 : vector<1x128xf32> to vector<8x128xf32>
    %13 = arith.addf %11, %12 : vector<8x128xf32>
    %14 = arith.truncf %13 : vector<8x128xf32> to vector<8x128xbf16>
    %15 = math.tanh %14 : vector<8x128xbf16>
    %cst_17 = arith.constant dense<0.000000e+00> : vector<8x128xf32>
    %16 = tpu.matmul %15, %5, %cst_17 {dimension_numbers = #tpu.dot_dimension_numbers<[1], [0], [0], [1], [0, 0, 1, 1], [], []>} : vector<8x128xbf16>, vector<128x128xbf16>, vector<8x128xf32> -> vector<8x128xf32>
    %17 = vector.broadcast %8 : vector<1x128xf32> to vector<8x128xf32>
    %18 = arith.addf %16, %17 : vector<8x128xf32>
    %19 = arith.truncf %18 : vector<8x128xf32> to vector<8x128xbf16>
    %20 = math.tanh %19 : vector<8x128xbf16>
    %cst_18 = arith.constant dense<0.000000e+00> : vector<8x128xf32>
    %21 = tpu.matmul %20, %6, %cst_18 {dimension_numbers = #tpu.dot_dimension_numbers<[1], [0], [0], [1], [0, 0, 1, 1], [], []>} : vector<8x128xbf16>, vector<128x128xbf16>, vector<8x128xf32> -> vector<8x128xf32>
    %22 = vector.broadcast %9 : vector<1x128xf32> to vector<8x128xf32>
    %23 = arith.addf %21, %22 : vector<8x128xf32>
    %24 = vector.broadcast %1 : f32 to vector<8x128xf32>
    %25 = arith.mulf %24, %23 : vector<8x128xf32>
    %26 = arith.addf %3, %25 : vector<8x128xf32>
    %27 = arith.truncf %26 : vector<8x128xf32> to vector<8x128xbf16>
    %cst_19 = arith.constant dense<0.000000e+00> : vector<8x128xf32>
    %28 = tpu.matmul %27, %4, %cst_19 {dimension_numbers = #tpu.dot_dimension_numbers<[1], [0], [0], [1], [0, 0, 1, 1], [], []>} : vector<8x128xbf16>, vector<128x128xbf16>, vector<8x128xf32> -> vector<8x128xf32>
    %29 = vector.broadcast %7 : vector<1x128xf32> to vector<8x128xf32>
    %30 = arith.addf %28, %29 : vector<8x128xf32>
    %31 = arith.truncf %30 : vector<8x128xf32> to vector<8x128xbf16>
    %32 = math.tanh %31 : vector<8x128xbf16>
    %cst_20 = arith.constant dense<0.000000e+00> : vector<8x128xf32>
    %33 = tpu.matmul %32, %5, %cst_20 {dimension_numbers = #tpu.dot_dimension_numbers<[1], [0], [0], [1], [0, 0, 1, 1], [], []>} : vector<8x128xbf16>, vector<128x128xbf16>, vector<8x128xf32> -> vector<8x128xf32>
    %34 = vector.broadcast %8 : vector<1x128xf32> to vector<8x128xf32>
    %35 = arith.addf %33, %34 : vector<8x128xf32>
    %36 = arith.truncf %35 : vector<8x128xf32> to vector<8x128xbf16>
    %37 = math.tanh %36 : vector<8x128xbf16>
    %cst_21 = arith.constant dense<0.000000e+00> : vector<8x128xf32>
    %38 = tpu.matmul %37, %6, %cst_21 {dimension_numbers = #tpu.dot_dimension_numbers<[1], [0], [0], [1], [0, 0, 1, 1], [], []>} : vector<8x128xbf16>, vector<128x128xbf16>, vector<8x128xf32> -> vector<8x128xf32>
    %39 = vector.broadcast %9 : vector<1x128xf32> to vector<8x128xf32>
    %40 = arith.addf %38, %39 : vector<8x128xf32>
    %cst_22 = arith.constant 2.000000e+00 : f32
    %41 = vector.broadcast %cst_22 : f32 to vector<8x128xf32>
    %42 = arith.mulf %41, %40 : vector<8x128xf32>
    %43 = arith.addf %23, %42 : vector<8x128xf32>
    %44 = vector.broadcast %1 : f32 to vector<8x128xf32>
    %45 = arith.mulf %44, %40 : vector<8x128xf32>
    %46 = arith.addf %3, %45 : vector<8x128xf32>
    %47 = arith.truncf %46 : vector<8x128xf32> to vector<8x128xbf16>
    %cst_23 = arith.constant dense<0.000000e+00> : vector<8x128xf32>
    %48 = tpu.matmul %47, %4, %cst_23 {dimension_numbers = #tpu.dot_dimension_numbers<[1], [0], [0], [1], [0, 0, 1, 1], [], []>} : vector<8x128xbf16>, vector<128x128xbf16>, vector<8x128xf32> -> vector<8x128xf32>
    %49 = vector.broadcast %7 : vector<1x128xf32> to vector<8x128xf32>
    %50 = arith.addf %48, %49 : vector<8x128xf32>
    %51 = arith.truncf %50 : vector<8x128xf32> to vector<8x128xbf16>
    %52 = math.tanh %51 : vector<8x128xbf16>
    %cst_24 = arith.constant dense<0.000000e+00> : vector<8x128xf32>
    %53 = tpu.matmul %52, %5, %cst_24 {dimension_numbers = #tpu.dot_dimension_numbers<[1], [0], [0], [1], [0, 0, 1, 1], [], []>} : vector<8x128xbf16>, vector<128x128xbf16>, vector<8x128xf32> -> vector<8x128xf32>
    %54 = vector.broadcast %8 : vector<1x128xf32> to vector<8x128xf32>
    %55 = arith.addf %53, %54 : vector<8x128xf32>
    %56 = arith.truncf %55 : vector<8x128xf32> to vector<8x128xbf16>
    %57 = math.tanh %56 : vector<8x128xbf16>
    %cst_25 = arith.constant dense<0.000000e+00> : vector<8x128xf32>
    %58 = tpu.matmul %57, %6, %cst_25 {dimension_numbers = #tpu.dot_dimension_numbers<[1], [0], [0], [1], [0, 0, 1, 1], [], []>} : vector<8x128xbf16>, vector<128x128xbf16>, vector<8x128xf32> -> vector<8x128xf32>
    %59 = vector.broadcast %9 : vector<1x128xf32> to vector<8x128xf32>
    %60 = arith.addf %58, %59 : vector<8x128xf32>
    %cst_26 = arith.constant 2.000000e+00 : f32
    %61 = vector.broadcast %cst_26 : f32 to vector<8x128xf32>
    %62 = arith.mulf %61, %60 : vector<8x128xf32>
    %63 = arith.addf %43, %62 : vector<8x128xf32>
    %64 = vector.broadcast %0 : f32 to vector<8x128xf32>
    %65 = arith.mulf %64, %60 : vector<8x128xf32>
    %66 = arith.addf %3, %65 : vector<8x128xf32>
    %67 = arith.truncf %66 : vector<8x128xf32> to vector<8x128xbf16>
    %cst_27 = arith.constant dense<0.000000e+00> : vector<8x128xf32>
    %68 = tpu.matmul %67, %4, %cst_27 {dimension_numbers = #tpu.dot_dimension_numbers<[1], [0], [0], [1], [0, 0, 1, 1], [], []>} : vector<8x128xbf16>, vector<128x128xbf16>, vector<8x128xf32> -> vector<8x128xf32>
    %69 = vector.broadcast %7 : vector<1x128xf32> to vector<8x128xf32>
    %70 = arith.addf %68, %69 : vector<8x128xf32>
    %71 = arith.truncf %70 : vector<8x128xf32> to vector<8x128xbf16>
    %72 = math.tanh %71 : vector<8x128xbf16>
    %cst_28 = arith.constant dense<0.000000e+00> : vector<8x128xf32>
    %73 = tpu.matmul %72, %5, %cst_28 {dimension_numbers = #tpu.dot_dimension_numbers<[1], [0], [0], [1], [0, 0, 1, 1], [], []>} : vector<8x128xbf16>, vector<128x128xbf16>, vector<8x128xf32> -> vector<8x128xf32>
    %74 = vector.broadcast %8 : vector<1x128xf32> to vector<8x128xf32>
    %75 = arith.addf %73, %74 : vector<8x128xf32>
    %76 = arith.truncf %75 : vector<8x128xf32> to vector<8x128xbf16>
    %77 = math.tanh %76 : vector<8x128xbf16>
    %cst_29 = arith.constant dense<0.000000e+00> : vector<8x128xf32>
    %78 = tpu.matmul %77, %6, %cst_29 {dimension_numbers = #tpu.dot_dimension_numbers<[1], [0], [0], [1], [0, 0, 1, 1], [], []>} : vector<8x128xbf16>, vector<128x128xbf16>, vector<8x128xf32> -> vector<8x128xf32>
    %79 = vector.broadcast %9 : vector<1x128xf32> to vector<8x128xf32>
    %80 = arith.addf %78, %79 : vector<8x128xf32>
    %81 = arith.addf %63, %80 : vector<8x128xf32>
    %82 = vector.broadcast %2 : f32 to vector<8x128xf32>
    %83 = arith.mulf %82, %81 : vector<8x128xf32>
    %84 = arith.addf %3, %83 : vector<8x128xf32>
    %c0_30 = arith.constant 0 : index
    %c0_31 = arith.constant 0 : index
    %85 = vector.load %arg9[%c0_30, %c0_31] : memref<8x128xf32, #tpu.memory_space<vmem>>, vector<8x128xf32>
    tpu.vector_store %arg9[%c0_30, %c0_31], %84 {strides = array<i32>} : memref<8x128xf32, #tpu.memory_space<vmem>>, vector<8x128xf32>,
    return
  }
  func.func @transform_0(%arg0: i32) -> (i32, i32) {
    %c0_i32 = arith.constant 0 : i32
    %c0_i32_0 = arith.constant 0 : i32
    %c0_i32_1 = arith.constant 0 : i32
    return %c0_i32, %c0_i32_0 : i32, i32
  }
  func.func @transform_1(%arg0: i32) -> (i32, i32) {
    %c0_i32 = arith.constant 0 : i32
    %c0_i32_0 = arith.constant 0 : i32
    return %arg0, %c0_i32 : i32, i32
  }
  func.func @transform_2(%arg0: i32) -> (i32, i32) {
    %c0_i32 = arith.constant 0 : i32
    %c0_i32_0 = arith.constant 0 : i32
    %c0_i32_1 = arith.constant 0 : i32
    return %c0_i32, %c0_i32_0 : i32, i32
  }
  func.func @transform_3(%arg0: i32) -> (i32, i32) {
    %c0_i32 = arith.constant 0 : i32
    %c0_i32_0 = arith.constant 0 : i32
    %c0_i32_1 = arith.constant 0 : i32
    return %c0_i32, %c0_i32_0 : i32, i32
  }
  func.func @transform_4(%arg0: i32) -> (i32, i32) {
    %c0_i32 = arith.constant 0 : i32
    %c0_i32_0 = arith.constant 0 : i32
    %c0_i32_1 = arith.constant 0 : i32
    return %c0_i32, %c0_i32_0 : i32, i32
  }
  func.func @transform_5(%arg0: i32) -> (i32, i32) {
    %c0_i32 = arith.constant 0 : i32
    %c0_i32_0 = arith.constant 0 : i32
    %c0_i32_1 = arith.constant 0 : i32
    return %c0_i32, %c0_i32_0 : i32, i32
  }
  func.func @transform_6(%arg0: i32) -> (i32, i32) {
    %c0_i32 = arith.constant 0 : i32
    %c0_i32_0 = arith.constant 0 : i32
    %c0_i32_1 = arith.constant 0 : i32
    return %c0_i32, %c0_i32_0 : i32, i32
  }
  func.func @transform_7(%arg0: i32) -> (i32, i32) {
    %c0_i32 = arith.constant 0 : i32
    %c0_i32_0 = arith.constant 0 : i32
    %c0_i32_1 = arith.constant 0 : i32
    return %c0_i32, %c0_i32_0 : i32, i32
  }
  func.func @transform_8(%arg0: i32) -> (i32, i32) {
    %c0_i32 = arith.constant 0 : i32
    %c0_i32_0 = arith.constant 0 : i32
    return %arg0, %c0_i32 : i32, i32
  }
}

</mosaic_0001>

<llo_original>
// kernel: tpu_custom_call.1
$region0: #{tpu_custom_call.1}
  #allocation0 [shape = 'u32[]', space=smem, size = 0x4, offset = 0x4, fixed_abs, tag = 'smem constant byte address 0x4 - core index']
  #allocation1 [shape = 'u32[72,128]{1,0:T(1,128)}', space=vmem, size = 0x9000, scoped, tag = 'internal scratch']
  #allocation2 [shape = 'f32[1,1]{1,0:T(1,128)S(6)}', space=smem, size = 0x200, scoped, tag = 'scoped memory for tpu_custom_call.1']
  %s0 = inlined_call_operand.<no memory space> [shape: f32[1,1], index: 0, kind: input, shape index: {}]
  %s1 = inlined_call_operand.hbm [shape: f32[8,128], index: 1, kind: input, shape index: {}, may-alias: {1,8}]
  %s2 = inlined_call_operand.hbm [shape: bf16[128,128], index: 2, kind: input, shape index: {}]
  %s3 = inlined_call_operand.vmem [shape: f32[1,128], index: 3, kind: input, shape index: {}]
  %s4 = inlined_call_operand.hbm [shape: bf16[128,128], index: 4, kind: input, shape index: {}]
  %s5 = inlined_call_operand.vmem [shape: f32[1,128], index: 5, kind: input, shape index: {}]
  %s6 = inlined_call_operand.hbm [shape: bf16[128,128], index: 6, kind: input, shape index: {}]
  %s7 = inlined_call_operand.vmem [shape: f32[1,128], index: 7, kind: input, shape index: {}]
  %s8 = inlined_call_operand.hbm [shape: f32[8,128], index: 8, kind: output, shape index: {}, may-alias: {1,8}]
  %s9 = sld [smem:[#allocation0]]
  $region58: #{tpu_custom_call.1} parent=0
    _
  %s11 = ssub.s32 1, %s9
  %s12 = scalar_select 0, %s11, %s9
  %13 = sst [smem:[#allocation2]] %s0
  $region1: #{tpu_custom_call.1} parent=0
    #allocation3 [shape = 'u8[4096]{0}', space=vmem, size = 0x1000, scoped, tag = 'input window, operand 1, single buffered']
    #allocation4 [shape = 's32[1]{0}', space=sflag, size = 0x4, scoped, tag = 'scoped memory for tpu_custom_call.1']
    #allocation5 [shape = 's32[1]{0}', space=sflag, size = 0x4, scoped, tag = 'scoped memory for tpu_custom_call.1']
    #allocation6 [shape = 'u8[32768]{0}', space=vmem, size = 0x8000, scoped, tag = 'input window, operand 2, single buffered']
    #allocation7 [shape = 's32[1]{0}', space=sflag, size = 0x4, scoped, tag = 'scoped memory for tpu_custom_call.1']
    #allocation8 [shape = 'u8[32768]{0}', space=vmem, size = 0x8000, scoped, tag = 'input window, operand 4, single buffered']
    #allocation9 [shape = 'u8[32768]{0}', space=vmem, size = 0x8000, scoped, tag = 'input window, operand 6, single buffered']
    #allocation10 [shape = 's32[1]{0}', space=sflag, size = 0x4, scoped, tag = 'scoped memory for tpu_custom_call.1']
    #allocation11 [shape = 'u8[4096]{0}', space=vmem, size = 0x1000, scoped, tag = 'output window, operand 0, single buffered']
    %14 = vsyncpa [#allocation4], 0
    %15 = vsyncpa [#allocation7], 0
    %16 = vsyncpa [#allocation10], 0
    %17 = vsyncpa [#allocation5], 0
    // Predicated region
    $region2: #{tpu_custom_call.1} parent=1 // pred_check
      _
    $region3: #{tpu_custom_call.1} parent=1 // pred_check_branch
      %19 = sbr.rel (0) target = $region5
    $region4: #{tpu_custom_call.1} parent=1 // pred_region
      _
    $region5: #{tpu_custom_call.1} parent=1 // pred_fallthru
      _
    // Predicated region
    $region6: #{tpu_custom_call.1} parent=1 // pred_check
      _
    $region7: #{tpu_custom_call.1} parent=1 // pred_check_branch
      %21 = sbr.rel (0) target = $region9
    $region8: #{tpu_custom_call.1} parent=1 // pred_region
      %23 = vsyncadd [#allocation4], 0
      %s25 = sshll.u32 %s1, 4
      %s26 = int_to_ptr.hbm [resolvable:$true] %s25
      %s27 = sshll.u32 [#allocation3], 4
      %s28 = int_to_ptr.vmem [resolvable:$true] %s27
      %30 = dma.hbm_to_vmem [thread:$0]  %s26, 128, %s28, [#allocation4]
    $region9: #{tpu_custom_call.1} parent=1 // pred_fallthru
      _
    // Predicated region
    $region10: #{tpu_custom_call.1} parent=1 // pred_check
      _
    $region11: #{tpu_custom_call.1} parent=1 // pred_check_branch
      %32 = sbr.rel (0) target = $region13
    $region12: #{tpu_custom_call.1} parent=1 // pred_region
      %34 = vsyncadd [#allocation7], 0
      %s35 = sshll.u32 %s2, 4
      %s36 = int_to_ptr.hbm [resolvable:$true] %s35
      %s37 = sshll.u32 [#allocation6], 4
      %s38 = int_to_ptr.vmem [resolvable:$true] %s37
      %43 = dma.hbm_to_vmem [thread:$0]  %s36, 1024, %s38, [#allocation7], 64, 64, 4
    $region13: #{tpu_custom_call.1} parent=1 // pred_fallthru
      _
    // Predicated region
    $region14: #{tpu_custom_call.1} parent=1 // pred_check
      _
    $region15: #{tpu_custom_call.1} parent=1 // pred_check_branch
      %45 = sbr.rel (0) target = $region17
    $region16: #{tpu_custom_call.1} parent=1 // pred_region
      _
    $region17: #{tpu_custom_call.1} parent=1 // pred_fallthru
      _
    // Predicated region
    $region18: #{tpu_custom_call.1} parent=1 // pred_check
      _
    $region19: #{tpu_custom_call.1} parent=1 // pred_check_branch
      %47 = sbr.rel (0) target = $region21
    $region20: #{tpu_custom_call.1} parent=1 // pred_region
      %49 = vsyncadd [#allocation7], 0
      %s50 = sshll.u32 %s4, 4
      %s51 = int_to_ptr.hbm [resolvable:$true] %s50
      %s52 = sshll.u32 [#allocation8], 4
      %s53 = int_to_ptr.vmem [resolvable:$true] %s52
      %58 = dma.hbm_to_vmem [thread:$0]  %s51, 1024, %s53, [#allocation7], 64, 64, 4
    $region21: #{tpu_custom_call.1} parent=1 // pred_fallthru
      _
    // Predicated region
    $region22: #{tpu_custom_call.1} parent=1 // pred_check
      _
    $region23: #{tpu_custom_call.1} parent=1 // pred_check_branch
      %60 = sbr.rel (0) target = $region25
    $region24: #{tpu_custom_call.1} parent=1 // pred_region
      _
    $region25: #{tpu_custom_call.1} parent=1 // pred_fallthru
      _
    // Predicated region
    $region26: #{tpu_custom_call.1} parent=1 // pred_check
      _
    $region27: #{tpu_custom_call.1} parent=1 // pred_check_branch
      %62 = sbr.rel (0) target = $region29
    $region28: #{tpu_custom_call.1} parent=1 // pred_region
      %64 = vsyncadd [#allocation10], 0
      %s65 = sshll.u32 %s6, 4
      %s66 = int_to_ptr.hbm [resolvable:$true] %s65
      %s67 = sshll.u32 [#allocation9], 4
      %s68 = int_to_ptr.vmem [resolvable:$true] %s67
      %73 = dma.hbm_to_vmem [thread:$0]  %s66, 1024, %s68, [#allocation10], 64, 64, 4
    $region29: #{tpu_custom_call.1} parent=1 // pred_fallthru
      _
    // Predicated region
    $region30: #{tpu_custom_call.1} parent=1 // pred_check
      _
    $region31: #{tpu_custom_call.1} parent=1 // pred_check_branch
      %75 = sbr.rel (0) target = $region33
    $region32: #{tpu_custom_call.1} parent=1 // pred_region
      _
    $region33: #{tpu_custom_call.1} parent=1 // pred_fallthru
      _
    // Predicated region
    $region34: #{tpu_custom_call.1} parent=1 // pred_check
      _
    $region35: #{tpu_custom_call.1} parent=1 // pred_check_branch
      %77 = sbr.rel (0) target = $region37
    $region36: #{tpu_custom_call.1} parent=1 // pred_region
      %79 = dma.done [#allocation4], 128
    $region37: #{tpu_custom_call.1} parent=1 // pred_fallthru
      _
    // Predicated region
    $region38: #{tpu_custom_call.1} parent=1 // pred_check
      _
    $region39: #{tpu_custom_call.1} parent=1 // pred_check_branch
      %81 = sbr.rel (0) target = $region41
    $region40: #{tpu_custom_call.1} parent=1 // pred_region
      %83 = dma.done [#allocation7], 1024
    $region41: #{tpu_custom_call.1} parent=1 // pred_fallthru
      _
    // Predicated region
    $region42: #{tpu_custom_call.1} parent=1 // pred_check
      _
    $region43: #{tpu_custom_call.1} parent=1 // pred_check_branch
      %85 = sbr.rel (0) target = $region45
    $region44: #{tpu_custom_call.1} parent=1 // pred_region
      %87 = dma.done [#allocation7], 1024
    $region45: #{tpu_custom_call.1} parent=1 // pred_fallthru
      _
    // Predicated region
    $region46: #{tpu_custom_call.1} parent=1 // pred_check
      _
    $region47: #{tpu_custom_call.1} parent=1 // pred_check_branch
      %89 = sbr.rel (0) target = $region49
    $region48: #{tpu_custom_call.1} parent=1 // pred_region
      %91 = dma.done [#allocation10], 1024
    $region49: #{tpu_custom_call.1} parent=1 // pred_fallthru
      _
    %s92 = sld [smem:[#allocation2]]
    %s93 = smul.f32 %s92, 0.5
    %s94 = smul.f32 %s92, 0.16666667
    %v95 = vld [vmem:[#allocation3] sm:$0xff]
    %v96 = vld [vmem:[#allocation6] sm:$0xf]
    %v97 = vld [vmem:[#allocation6 + $0x4] sm:$0xf]
    %v98 = vld [vmem:[#allocation6 + $0x8] sm:$0xf]
    %v99 = vld [vmem:[#allocation6 + $0xc] sm:$0xf]
    %v100 = vld [vmem:[#allocation6 + $0x10] sm:$0xf]
    %v101 = vld [vmem:[#allocation6 + $0x14] sm:$0xf]
    %v102 = vld [vmem:[#allocation6 + $0x18] sm:$0xf]
    %v103 = vld [vmem:[#allocation6 + $0x1c] sm:$0xf]
    %v104 = vld [vmem:[#allocation6 + $0x20] sm:$0xf]
    %v105 = vld [vmem:[#allocation6 + $0x24] sm:$0xf]
    %v106 = vld [vmem:[#allocation6 + $0x28] sm:$0xf]
    %v107 = vld [vmem:[#allocation6 + $0x2c] sm:$0xf]
    %v108 = vld [vmem:[#allocation6 + $0x30] sm:$0xf]
    %v109 = vld [vmem:[#allocation6 + $0x34] sm:$0xf]
    %v110 = vld [vmem:[#allocation6 + $0x38] sm:$0xf]
    %v111 = vld [vmem:[#allocation6 + $0x3c] sm:$0xf]
    %v112 = vld [vmem:[#allocation8] sm:$0xf]
    %v113 = vld [vmem:[#allocation8 + $0x4] sm:$0xf]
    %v114 = vld [vmem:[#allocation8 + $0x8] sm:$0xf]
    %v115 = vld [vmem:[#allocation8 + $0xc] sm:$0xf]
    %v116 = vld [vmem:[#allocation8 + $0x10] sm:$0xf]
    %v117 = vld [vmem:[#allocation8 + $0x14] sm:$0xf]
    %v118 = vld [vmem:[#allocation8 + $0x18] sm:$0xf]
    %v119 = vld [vmem:[#allocation8 + $0x1c] sm:$0xf]
    %v120 = vld [vmem:[#allocation8 + $0x20] sm:$0xf]
    %v121 = vld [vmem:[#allocation8 + $0x24] sm:$0xf]
    %v122 = vld [vmem:[#allocation8 + $0x28] sm:$0xf]
    %v123 = vld [vmem:[#allocation8 + $0x2c] sm:$0xf]
    %v124 = vld [vmem:[#allocation8 + $0x30] sm:$0xf]
    %v125 = vld [vmem:[#allocation8 + $0x34] sm:$0xf]
    %v126 = vld [vmem:[#allocation8 + $0x38] sm:$0xf]
    %v127 = vld [vmem:[#allocation8 + $0x3c] sm:$0xf]
    %v128 = vld [vmem:[#allocation9] sm:$0xf]
    %v129 = vld [vmem:[#allocation9 + $0x4] sm:$0xf]
    %v130 = vld [vmem:[#allocation9 + $0x8] sm:$0xf]
    %v131 = vld [vmem:[#allocation9 + $0xc] sm:$0xf]
    %v132 = vld [vmem:[#allocation9 + $0x10] sm:$0xf]
    %v133 = vld [vmem:[#allocation9 + $0x14] sm:$0xf]
    %v134 = vld [vmem:[#allocation9 + $0x18] sm:$0xf]
    %v135 = vld [vmem:[#allocation9 + $0x1c] sm:$0xf]
    %v136 = vld [vmem:[#allocation9 + $0x20] sm:$0xf]
    %v137 = vld [vmem:[#allocation9 + $0x24] sm:$0xf]
    %v138 = vld [vmem:[#allocation9 + $0x28] sm:$0xf]
    %v139 = vld [vmem:[#allocation9 + $0x2c] sm:$0xf]
    %v140 = vld [vmem:[#allocation9 + $0x30] sm:$0xf]
    %v141 = vld [vmem:[#allocation9 + $0x34] sm:$0xf]
    %v142 = vld [vmem:[#allocation9 + $0x38] sm:$0xf]
    %v143 = vld [vmem:[#allocation9 + $0x3c] sm:$0xf]
    %v144 = vld [vmem:[%s3] sm:$0x1]
    %v145 = vld [vmem:[%s5] sm:$0x1]
    %v146 = vld [vmem:[%s7] sm:$0x1]
    %v147 = vpack.c.bf16 %v95, %v95
    %v149 = vperm.slane %v144, 0
    %v167 = vunpack.c.l.b16 %v96
    %v168 = vunpack.c.l.b16 %v97
    %v169 = vunpack.c.l.b16 %v98
    %v170 = vunpack.c.l.b16 %v99
    %v171 = vunpack.c.l.b16 %v100
    %v172 = vunpack.c.l.b16 %v101
    %v173 = vunpack.c.l.b16 %v102
    %v174 = vunpack.c.l.b16 %v103
    %v175 = vunpack.c.l.b16 %v104
    %v176 = vunpack.c.l.b16 %v105
    %v177 = vunpack.c.l.b16 %v106
    %v178 = vunpack.c.l.b16 %v107
    %v179 = vunpack.c.l.b16 %v108
    %v180 = vunpack.c.l.b16 %v109
    %v181 = vunpack.c.l.b16 %v110
    %v182 = vunpack.c.l.b16 %v111
    %v183 = vpack.c.b16 %v168, %v167
    %v184 = vpack.c.b16 %v170, %v169
    %v185 = vpack.c.b16 %v172, %v171
    %v186 = vpack.c.b16 %v174, %v173
    %v187 = vpack.c.b16 %v176, %v175
    %v188 = vpack.c.b16 %v178, %v177
    %v189 = vpack.c.b16 %v180, %v179
    %v190 = vpack.c.b16 %v182, %v181
    %199 = vmatpush.bf16.msra.mxu0 %v190
    %200 = vmatpush.bf16.msra.mxu0 %v189
    %201 = vmatpush.bf16.msra.mxu0 %v188
    %202 = vmatpush.bf16.msra.mxu0 %v187
    %203 = vmatpush.bf16.msra.mxu0 %v186
    %204 = vmatpush.bf16.msra.mxu0 %v185
    %205 = vmatpush.bf16.msra.mxu0 %v184
    %206 = vmatpush.bf16.msra.mxu0 %v183
    %207 = vmatmul.bf16.gmra.mxu0 %v147
    %v208 = vpop.f32.mrf.mxu0
    %v209 = vadd.f32 %v149, %v208
    %v210 = vpop.f32.mrf.mxu0
    %211 = vdwg.mxu0
    %v212 = vpack.c.bf16 %v209, %v209
    %v213 = vunpack.c.l.bf16 %v212
    %v214 = vtanh.pop %v213
    %v215 = vpack.c.bf16 %v214, %v214
    %v217 = vperm.slane %v145, 0
    %v235 = vunpack.c.l.b16 %v112
    %v236 = vunpack.c.l.b16 %v113
    %v237 = vunpack.c.l.b16 %v114
    %v238 = vunpack.c.l.b16 %v115
    %v239 = vunpack.c.l.b16 %v116
    %v240 = vunpack.c.l.b16 %v117
    %v241 = vunpack.c.l.b16 %v118
    %v242 = vunpack.c.l.b16 %v119
    %v243 = vunpack.c.l.b16 %v120
    %v244 = vunpack.c.l.b16 %v121
    %v245 = vunpack.c.l.b16 %v122
    %v246 = vunpack.c.l.b16 %v123
    %v247 = vunpack.c.l.b16 %v124
    %v248 = vunpack.c.l.b16 %v125
    %v249 = vunpack.c.l.b16 %v126
    %v250 = vunpack.c.l.b16 %v127
    %v251 = vpack.c.b16 %v236, %v235
    %v252 = vpack.c.b16 %v238, %v237
    %v253 = vpack.c.b16 %v240, %v239
    %v254 = vpack.c.b16 %v242, %v241
    %v255 = vpack.c.b16 %v244, %v243
    %v256 = vpack.c.b16 %v246, %v245
    %v257 = vpack.c.b16 %v248, %v247
    %v258 = vpack.c.b16 %v250, %v249
    %267 = vmatpush.bf16.msra.mxu0 %v258
    %268 = vmatpush.bf16.msra.mxu0 %v257
    %269 = vmatpush.bf16.msra.mxu0 %v256
    %270 = vmatpush.bf16.msra.mxu0 %v255
    %271 = vmatpush.bf16.msra.mxu0 %v254
    %272 = vmatpush.bf16.msra.mxu0 %v253
    %273 = vmatpush.bf16.msra.mxu0 %v252
    %274 = vmatpush.bf16.msra.mxu0 %v251
    %275 = vmatmul.bf16.gmra.mxu0 %v215
    %v276 = vpop.f32.mrf.mxu0
    %v277 = vadd.f32 %v217, %v276
    %v278 = vpop.f32.mrf.mxu0
    %279 = vdwg.mxu0
    %v280 = vpack.c.bf16 %v277, %v277
    %v281 = vunpack.c.l.bf16 %v280
    %v282 = vtanh.pop %v281
    %v283 = vpack.c.bf16 %v282, %v282
    %v285 = vperm.slane %v146, 0
    %v303 = vunpack.c.l.b16 %v128
    %v304 = vunpack.c.l.b16 %v129
    %v305 = vunpack.c.l.b16 %v130
    %v306 = vunpack.c.l.b16 %v131
    %v307 = vunpack.c.l.b16 %v132
    %v308 = vunpack.c.l.b16 %v133
    %v309 = vunpack.c.l.b16 %v134
    %v310 = vunpack.c.l.b16 %v135
    %v311 = vunpack.c.l.b16 %v136
    %v312 = vunpack.c.l.b16 %v137
    %v313 = vunpack.c.l.b16 %v138
    %v314 = vunpack.c.l.b16 %v139
    %v315 = vunpack.c.l.b16 %v140
    %v316 = vunpack.c.l.b16 %v141
    %v317 = vunpack.c.l.b16 %v142
    %v318 = vunpack.c.l.b16 %v143
    %v319 = vpack.c.b16 %v304, %v303
    %v320 = vpack.c.b16 %v306, %v305
    %v321 = vpack.c.b16 %v308, %v307
    %v322 = vpack.c.b16 %v310, %v309
    %v323 = vpack.c.b16 %v312, %v311
    %v324 = vpack.c.b16 %v314, %v313
    %v325 = vpack.c.b16 %v316, %v315
    %v326 = vpack.c.b16 %v318, %v317
    %335 = vmatpush.bf16.msra.mxu0 %v326
    %336 = vmatpush.bf16.msra.mxu0 %v325
    %337 = vmatpush.bf16.msra.mxu0 %v324
    %338 = vmatpush.bf16.msra.mxu0 %v323
    %339 = vmatpush.bf16.msra.mxu0 %v322
    %340 = vmatpush.bf16.msra.mxu0 %v321
    %341 = vmatpush.bf16.msra.mxu0 %v320
    %342 = vmatpush.bf16.msra.mxu0 %v319
    %343 = vmatmul.bf16.gmra.mxu0 %v283
    %v344 = vpop.f32.mrf.mxu0
    %v345 = vadd.f32 %v285, %v344
    %v346 = vpop.f32.mrf.mxu0
    %347 = vdwg.mxu0
    %v348 = vstv %s93
    %v349 = vmul.f32 %v348, %v345
    %v350 = vadd.f32 %v95, %v349
    %v351 = vpack.c.bf16 %v350, %v350
    %352 = vmatpush.bf16.msra.mxu0 %v190
    %353 = vmatpush.bf16.msra.mxu0 %v189
    %354 = vmatpush.bf16.msra.mxu0 %v188
    %355 = vmatpush.bf16.msra.mxu0 %v187
    %356 = vmatpush.bf16.msra.mxu0 %v186
    %357 = vmatpush.bf16.msra.mxu0 %v185
    %358 = vmatpush.bf16.msra.mxu0 %v184
    %359 = vmatpush.bf16.msra.mxu0 %v183
    %360 = vmatmul.bf16.gmra.mxu0 %v351
    %v361 = vpop.f32.mrf.mxu0
    %v362 = vadd.f32 %v149, %v361
    %v363 = vpop.f32.mrf.mxu0
    %364 = vdwg.mxu0
    %v365 = vpack.c.bf16 %v362, %v362
    %v366 = vunpack.c.l.bf16 %v365
    %v367 = vtanh.pop %v366
    %v368 = vpack.c.bf16 %v367, %v367
    %369 = vmatpush.bf16.msra.mxu0 %v258
    %370 = vmatpush.bf16.msra.mxu0 %v257
    %371 = vmatpush.bf16.msra.mxu0 %v256
    %372 = vmatpush.bf16.msra.mxu0 %v255
    %373 = vmatpush.bf16.msra.mxu0 %v254
    %374 = vmatpush.bf16.msra.mxu0 %v253
    %375 = vmatpush.bf16.msra.mxu0 %v252
    %376 = vmatpush.bf16.msra.mxu0 %v251
    %377 = vmatmul.bf16.gmra.mxu0 %v368
    %v378 = vpop.f32.mrf.mxu0
    %v379 = vadd.f32 %v217, %v378
    %v380 = vpop.f32.mrf.mxu0
    %381 = vdwg.mxu0
    %v382 = vpack.c.bf16 %v379, %v379
    %v383 = vunpack.c.l.bf16 %v382
    %v384 = vtanh.pop %v383
    %v385 = vpack.c.bf16 %v384, %v384
    %386 = vmatpush.bf16.msra.mxu0 %v326
    %387 = vmatpush.bf16.msra.mxu0 %v325
    %388 = vmatpush.bf16.msra.mxu0 %v324
    %389 = vmatpush.bf16.msra.mxu0 %v323
    %390 = vmatpush.bf16.msra.mxu0 %v322
    %391 = vmatpush.bf16.msra.mxu0 %v321
    %392 = vmatpush.bf16.msra.mxu0 %v320
    %393 = vmatpush.bf16.msra.mxu0 %v319
    %394 = vmatmul.bf16.gmra.mxu0 %v385
    %v395 = vpop.f32.mrf.mxu0
    %v396 = vadd.f32 %v285, %v395
    %v397 = vpop.f32.mrf.mxu0
    %398 = vdwg.mxu0
    %v399 = vmul.f32 %v396, 2.0
    %v400 = vadd.f32 %v345, %v399
    %v401 = vmul.f32 %v348, %v396
    %v402 = vadd.f32 %v95, %v401
    %v403 = vpack.c.bf16 %v402, %v402
    %404 = vmatpush.bf16.msra.mxu0 %v190
    %405 = vmatpush.bf16.msra.mxu0 %v189
    %406 = vmatpush.bf16.msra.mxu0 %v188
    %407 = vmatpush.bf16.msra.mxu0 %v187
    %408 = vmatpush.bf16.msra.mxu0 %v186
    %409 = vmatpush.bf16.msra.mxu0 %v185
    %410 = vmatpush.bf16.msra.mxu0 %v184
    %411 = vmatpush.bf16.msra.mxu0 %v183
    %412 = vmatmul.bf16.gmra.mxu0 %v403
    %v413 = vpop.f32.mrf.mxu0
    %v414 = vadd.f32 %v149, %v413
    %v415 = vpop.f32.mrf.mxu0
    %416 = vdwg.mxu0
    %v417 = vpack.c.bf16 %v414, %v414
    %v418 = vunpack.c.l.bf16 %v417
    %v419 = vtanh.pop %v418
    %v420 = vpack.c.bf16 %v419, %v419
    %421 = vmatpush.bf16.msra.mxu0 %v258
    %422 = vmatpush.bf16.msra.mxu0 %v257
    %423 = vmatpush.bf16.msra.mxu0 %v256
    %424 = vmatpush.bf16.msra.mxu0 %v255
    %425 = vmatpush.bf16.msra.mxu0 %v254
    %426 = vmatpush.bf16.msra.mxu0 %v253
    %427 = vmatpush.bf16.msra.mxu0 %v252
    %428 = vmatpush.bf16.msra.mxu0 %v251
    %429 = vmatmul.bf16.gmra.mxu0 %v420
    %v430 = vpop.f32.mrf.mxu0
    %v431 = vadd.f32 %v217, %v430
    %v432 = vpop.f32.mrf.mxu0
    %433 = vdwg.mxu0
    %v434 = vpack.c.bf16 %v431, %v431
    %v435 = vunpack.c.l.bf16 %v434
    %v436 = vtanh.pop %v435
    %v437 = vpack.c.bf16 %v436, %v436
    %438 = vmatpush.bf16.msra.mxu0 %v326
    %439 = vmatpush.bf16.msra.mxu0 %v325
    %440 = vmatpush.bf16.msra.mxu0 %v324
    %441 = vmatpush.bf16.msra.mxu0 %v323
    %442 = vmatpush.bf16.msra.mxu0 %v322
    %443 = vmatpush.bf16.msra.mxu0 %v321
    %444 = vmatpush.bf16.msra.mxu0 %v320
    %445 = vmatpush.bf16.msra.mxu0 %v319
    %446 = vmatmul.bf16.gmra.mxu0 %v437
    %v447 = vpop.f32.mrf.mxu0
    %v448 = vadd.f32 %v285, %v447
    %v449 = vpop.f32.mrf.mxu0
    %450 = vdwg.mxu0
    %v451 = vmul.f32 %v448, 2.0
    %v452 = vadd.f32 %v400, %v451
    %v453 = vstv %s92
    %v454 = vmul.f32 %v453, %v448
    %v455 = vadd.f32 %v95, %v454
    %v456 = vpack.c.bf16 %v455, %v455
    %457 = vmatpush.bf16.msra.mxu0 %v190
    %458 = vmatpush.bf16.msra.mxu0 %v189
    %459 = vmatpush.bf16.msra.mxu0 %v188
    %460 = vmatpush.bf16.msra.mxu0 %v187
    %461 = vmatpush.bf16.msra.mxu0 %v186
    %462 = vmatpush.bf16.msra.mxu0 %v185
    %463 = vmatpush.bf16.msra.mxu0 %v184
    %464 = vmatpush.bf16.msra.mxu0 %v183
    %465 = vmatmul.bf16.gmra.mxu0 %v456
    %v466 = vpop.f32.mrf.mxu0
    %v467 = vadd.f32 %v149, %v466
    %v468 = vpop.f32.mrf.mxu0
    %469 = vdwg.mxu0
    %v470 = vpack.c.bf16 %v467, %v467
    %v471 = vunpack.c.l.bf16 %v470
    %v472 = vtanh.pop %v471
    %v473 = vpack.c.bf16 %v472, %v472
    %474 = vmatpush.bf16.msra.mxu0 %v258
    %475 = vmatpush.bf16.msra.mxu0 %v257
    %476 = vmatpush.bf16.msra.mxu0 %v256
    %477 = vmatpush.bf16.msra.mxu0 %v255
    %478 = vmatpush.bf16.msra.mxu0 %v254
    %479 = vmatpush.bf16.msra.mxu0 %v253
    %480 = vmatpush.bf16.msra.mxu0 %v252
    %481 = vmatpush.bf16.msra.mxu0 %v251
    %482 = vmatmul.bf16.gmra.mxu0 %v473
    %v483 = vpop.f32.mrf.mxu0
    %v484 = vadd.f32 %v217, %v483
    %v485 = vpop.f32.mrf.mxu0
    %486 = vdwg.mxu0
    %v487 = vpack.c.bf16 %v484, %v484
    %v488 = vunpack.c.l.bf16 %v487
    %v489 = vtanh.pop %v488
    %v490 = vpack.c.bf16 %v489, %v489
    %491 = vmatpush.bf16.msra.mxu0 %v326
    %492 = vmatpush.bf16.msra.mxu0 %v325
    %493 = vmatpush.bf16.msra.mxu0 %v324
    %494 = vmatpush.bf16.msra.mxu0 %v323
    %495 = vmatpush.bf16.msra.mxu0 %v322
    %496 = vmatpush.bf16.msra.mxu0 %v321
    %497 = vmatpush.bf16.msra.mxu0 %v320
    %498 = vmatpush.bf16.msra.mxu0 %v319
    %499 = vmatmul.bf16.gmra.mxu0 %v490
    %v500 = vpop.f32.mrf.mxu0
    %v501 = vadd.f32 %v285, %v500
    %v502 = vpop.f32.mrf.mxu0
    %503 = vdwg.mxu0
    %v504 = vadd.f32 %v452, %v501
    %v505 = vstv %s94
    %v506 = vmul.f32 %v505, %v504
    %v507 = vadd.f32 %v95, %v506
    %508 = vst [vmem:[#allocation11] sm:$0xff] %v507
    // Predicated region
    $region50: #{tpu_custom_call.1} parent=1 // pred_check
      _
    $region51: #{tpu_custom_call.1} parent=1 // pred_check_branch
      %510 = sbr.rel (0) target = $region53
    $region52: #{tpu_custom_call.1} parent=1 // pred_region
      %512 = vsyncadd [#allocation5], 0
      %s514 = sshll.u32 [#allocation11], 4
      %s515 = int_to_ptr.vmem [resolvable:$true] %s514
      %s516 = sshll.u32 %s8, 4
      %s517 = int_to_ptr.hbm [resolvable:$true] %s516
      %519 = dma.vmem_to_hbm [thread:$0]  %s515, 128, %s517, [#allocation5]
    $region53: #{tpu_custom_call.1} parent=1 // pred_fallthru
      _
    // Predicated region
    $region54: #{tpu_custom_call.1} parent=1 // pred_check
      _
    $region55: #{tpu_custom_call.1} parent=1 // pred_check_branch
      %521 = sbr.rel (0) target = $region57
    $region56: #{tpu_custom_call.1} parent=1 // pred_region
      %523 = dma.done [#allocation5], 128
    $region57: #{tpu_custom_call.1} parent=1 // pred_fallthru
      _
    %524 = vsyncpa [#allocation4], 1
    %525 = vsyncpa [#allocation7], 1
    %526 = vsyncpa [#allocation10], 1
    %527 = vsyncpa [#allocation5], 1

</llo_original>
